<compile_context>
chip_gen: v7x
topology: tpu7x:2x2x1
jax: 0.10.0
libtpu: 0.0.40
codegen_flags: <defaults>
</compile_context>

<pallas_src>
import functools

import jax
import jax.numpy as jnp
from jax.experimental import pallas as pl
from jax.experimental.pallas import tpu as pltpu

LN_EPS = 1e-5      # torch.nn.LayerNorm default
L2_EPS = 1e-12     # torch.nn.functional.normalize default


def _round_up(x, m):
    return (x + m - 1) // m * m


def _vmem_sizing():
    """(tile-sizing budget, explicit scoped-VMEM limit) derived from the chip.

    Budget (~60% of physical VMEM) is what the tile heuristic sizes against;
    the explicit vmem_limit_bytes passed to the compiler is larger (~90%) so
    the chosen tiles can actually materialize on v5e/v6e/v7x alike.
    """
    try:
        cap = int(pltpu.get_tpu_info().vmem_capacity_bytes)
    except Exception:
        cap = 64 * 1024 * 1024          # conservative fallback = v7x physical
    budget = int(cap * 0.60)
    limit = min(int(cap * 0.90), 127 * 1024 * 1024)
    return budget, limit


def _single_buffered(shape, index_map):
    """BlockSpec for a constant-index (resident) parameter.

    Pallas double-buffers every input by default; a constant index map means
    the block is DMA'd exactly once, so the second buffer is pure VMEM waste.
    """
    try:
        return pl.BlockSpec(shape, index_map, pipeline_mode=pl.Buffered(1))
    except TypeError:                    # older BlockSpec without pipeline_mode
        return pl.BlockSpec(shape, index_map)


# ----------------------------------------------------------------------------
# Kernels
# ----------------------------------------------------------------------------

def _layernorm_l2(x_ref, gamma_ref, beta_ref):
    """Fused LayerNorm (two-pass variance, f32 stats) + L2 row-normalize."""
    x = x_ref[...].astype(jnp.float32)
    inv_d = 1.0 / x.shape[-1]
    mean = jnp.sum(x, axis=-1, keepdims=True) * inv_d
    xc = x - mean
    var = jnp.sum(xc * xc, axis=-1, keepdims=True) * inv_d   # biased, like torch LN
    xn = xc * jax.lax.rsqrt(var + LN_EPS)
    xn = xn * gamma_ref[...] + beta_ref[...]                  # gamma/beta already f32
    # F.normalize(p=2, dim=1): x / max(||x||_2, eps) as a reciprocal-multiply
    # (the approx reciprocal runs on the otherwise idle EUP slot).
    l2 = jnp.sqrt(jnp.sum(xn * xn, axis=-1, keepdims=True))
    return xn * pl.reciprocal(jnp.maximum(l2, L2_EPS), approx=True)


def _lc_resident_kernel(x_ref, gamma_ref, beta_ref, w_ref, bias_ref, o_ref):
    """Resident-weight path: whole (D, N_pad) weight lives in VMEM.

    x_ref:     (TB, D)      input batch tile (any float dtype)
    gamma_ref: (1, D)  f32  LayerNorm weight   (resident, single-buffered)
    beta_ref:  (1, D)  f32  LayerNorm bias     (resident, single-buffered)
    w_ref:     (D, N_pad)   bf16 W^T           (resident, single-buffered)
    bias_ref:  (1, N_pad)   f32 Linear bias    (resident, single-buffered)
    o_ref:     (TB, N_pad)  f32 logits tile
    """
    y = _layernorm_l2(x_ref, gamma_ref, beta_ref).astype(w_ref.dtype)
    logits = jnp.dot(y, w_ref[...], preferred_element_type=jnp.float32)
    o_ref[...] = (logits + bias_ref[...]).astype(o_ref.dtype)


def _lc_ksplit_kernel(x_ref, gamma_ref, beta_ref, w_ref, bias_ref, o_ref,
                      y_ref, acc_ref, *, d, tk, num_k):
    """K-split path for weights too large to keep resident (v7x priority).

    Grid = (batch_tiles, num_k).  The normalized activations are computed at
    k == 0 and stashed (bf16) in VMEM scratch; each k step accumulates one
    (TB, tk) @ (tk, N_pad) partial matmul into an f32 accumulator.
    """
    k = pl.program_id(1)

    @pl.when(k == 0)
    def _():
        y = _layernorm_l2(x_ref, gamma_ref, beta_ref).astype(y_ref.dtype)
        if d % tk != 0:
            # Zero the padded tail of the last chunk so the zero-padded weight
            # rows multiply exact zeros (never stale VMEM garbage).
            y_ref[num_k - 1] = jnp.zeros_like(y_ref[num_k - 1])
        for kk in range(num_k):                       # static unroll
            lo = kk * tk
            hi = min(lo + tk, d)
            if hi - lo == tk:
                y_ref[kk] = y[:, lo:hi]
            else:
                y_ref[kk, :, : hi - lo] = y[:, lo:hi]
        acc_ref[...] = jnp.zeros_like(acc_ref)

    acc_ref[...] += jnp.dot(y_ref[k], w_ref[...],
                            preferred_element_type=jnp.float32)

    @pl.when(k == num_k - 1)
    def _():
        o_ref[...] = (acc_ref[...] + bias_ref[...]).astype(o_ref.dtype)


# ----------------------------------------------------------------------------
# Wrapper: prepare (once) + apply (per batch)
# ----------------------------------------------------------------------------

def prepare_linear_classifier_params(gamma, beta, weight, bias, *,
                                     mxu_dtype=jnp.bfloat16,
                                     force_k_split=False,
                                     k_tile=None):
    """Hoist all per-parameter work out of the per-call path.

    Builds the transposed, lane-padded, bf16 weight slab, padded f32 bias and
    f32 gamma/beta exactly once, and fixes the batch-independent tiling
    decisions (output lane padding, resident vs. K-split, K tile size).
    """
    n, d = weight.shape
    budget, vmem_limit = _vmem_sizing()

    # Lane-dense output padding: 256 fills the 2x256^2 MXU on v6e/v7x when the
    # matmul matters (large N); 128 avoids useless padding traffic for small N
    # and is already optimal on v5e's 128-wide MXU.
    lane_mult = 256 if n >= 256 else 128
    n_pad = _round_up(n, lane_mult)

    w_itemsize = jnp.dtype(mxu_dtype).itemsize
    k_split = force_k_split or (d * n_pad * w_itemsize > budget // 4)

    if k_split:
        if k_tile is not None:
            tk = _round_up(max(int(k_tile), 128), 128)
        else:
            # Double-buffered weight K-block gets ~budget/8.
            tk = ((budget // 8) // (2 * n_pad * w_itemsize)) // 128 * 128
            tk = max(128, min(2048, tk))
        tk = min(tk, _round_up(d, 128))
        d_pad = _round_up(d, tk)          # zero-padded weight rows contribute 0
        num_k = d_pad // tk
    else:
        tk, d_pad, num_k = None, d, 1

    w_t = jnp.zeros((d_pad, n_pad), mxu_dtype).at[:d, :n].set(
        weight.T.astype(mxu_dtype))
    bias_p = jnp.zeros((1, n_pad), jnp.float32).at[:, :n].set(
        bias.astype(jnp.float32))
    gamma2d = jnp.asarray(gamma, jnp.float32).reshape(1, d)
    beta2d = jnp.asarray(beta, jnp.float32).reshape(1, d)

    return dict(w_t=w_t, bias=bias_p, gamma=gamma2d, beta=beta2d,
                d=d, n=n, n_pad=n_pad, k_split=k_split, tk=tk, num_k=num_k,
                w_itemsize=w_itemsize, budget=budget, vmem_limit=vmem_limit)


def _pick_tb(batch, x_itemsize, params):
    """Largest batch tile whose blocks + scratch + in-kernel f32 temporaries
    fit the chip-derived VMEM budget, then clamped so the grid has >= 2 steps
    whenever the batch allows it (keeps both v7x TensorCores busy)."""
    d, n_pad = params["d"], params["n_pad"]
    w_itemsize = params["w_itemsize"]

    if params["k_split"]:
        tk, num_k = params["tk"], params["num_k"]
        fixed = (2 * tk * n_pad * w_itemsize        # W^T K-block, double-buffered
                 + 2 * d * 4 + n_pad * 4)           # gamma+beta, bias (single buf)

        def per_tile(tb):
            return (2 * tb * d * x_itemsize         # x block, double-buffered
                    + 2 * tb * n_pad * 4            # out block, double-buffered
                    + tb * num_k * tk * w_itemsize  # y scratch (bf16)
                    + tb * n_pad * 4                # f32 accumulator scratch
                    + 4 * tb * d * 4)               # in-kernel f32 temporaries
    else:
        fixed = (d * n_pad * w_itemsize             # resident W^T, single-buffered
                 + 2 * d * 4 + n_pad * 4)

        def per_tile(tb):
            return (2 * tb * d * x_itemsize
                    + 2 * tb * n_pad * 4
                    + tb * n_pad * 4                # f32 logits temporary
                    + 4 * tb * d * 4)               # in-kernel f32 temporaries

    tb = 2048                                       # big tiles amortize step overhead
    while tb > 8 and fixed + per_tile(tb) > params["budget"]:
        tb //= 2

    if batch <= 8:
        return max(batch, 1)                        # single block == full batch dim
    tb = max(8, min(tb, _round_up(batch, 8)))
    if pl.cdiv(batch, tb) < 2:                      # guarantee >= 2 grid steps
        tb = max(8, _round_up(pl.cdiv(batch, 2), 8))
    return tb


def linear_classifier_apply(x, params):
    """x: (B, C, H, W) or (B, D); returns (B, num_labels) f32 logits."""
    b = x.shape[0]
    x2d = x.reshape(b, -1)                          # == torch x.view(x.size(0), -1)
    d, n, n_pad = params["d"], params["n"], params["n_pad"]
    if x2d.shape[1] != d:
        raise ValueError(f"expected flattened dim {d}, got {x2d.shape[1]}")

    tb = _pick_tb(b, x2d.dtype.itemsize, params)
    num_bt = pl.cdiv(b, tb)                         # ragged last tile, no jnp.pad

    if not params["k_split"]:
        grid = (num_bt,)
        in_specs = [
            pl.BlockSpec((tb, d), lambda i: (i, 0)),                 # x tile
            _single_buffered((1, d), lambda i: (0, 0)),              # gamma
            _single_buffered((1, d), lambda i: (0, 0)),              # beta
            _single_buffered((d, n_pad), lambda i: (0, 0)),          # W^T
            _single_buffered((1, n_pad), lambda i: (0, 0)),          # bias
        ]
        out_specs = pl.BlockSpec((tb, n_pad), lambda i: (i, 0))
        kernel = _lc_resident_kernel
        scratch = []
        semantics = ("parallel",)
    else:
        tk, num_k = params["tk"], params["num_k"]
        grid = (num_bt, num_k)                      # reduction (K) axis last
        in_specs = [
            pl.BlockSpec((tb, d), lambda i, k: (i, 0)),              # x: const over k
            _single_buffered((1, d), lambda i, k: (0, 0)),           # gamma
            _single_buffered((1, d), lambda i, k: (0, 0)),           # beta
            pl.BlockSpec((tk, n_pad), lambda i, k: (k, 0)),          # W^T K-tile
            _single_buffered((1, n_pad), lambda i, k: (0, 0)),       # bias
        ]
        out_specs = pl.BlockSpec((tb, n_pad), lambda i, k: (i, 0))
        kernel = functools.partial(_lc_ksplit_kernel, d=d, tk=tk, num_k=num_k)
        scratch = [pltpu.VMEM((num_k, tb, tk), params["w_t"].dtype),  # y (bf16)
                   pltpu.VMEM((tb, n_pad), jnp.float32)]              # accumulator
        semantics = ("parallel", "arbitrary")

    out = pl.pallas_call(
        kernel,
        out_shape=jax.ShapeDtypeStruct((b, n_pad), jnp.float32),
        grid_spec=pltpu.PrefetchScalarGridSpec(
            num_scalar_prefetch=0,
            grid=grid,
            in_specs=in_specs,
            out_specs=out_specs,
            scratch_shapes=scratch),
        compiler_params=pltpu.CompilerParams(
            dimension_semantics=semantics,
            vmem_limit_bytes=params["vmem_limit"]),
    )(x2d, params["gamma"], params["beta"], params["w_t"], params["bias"])

    return out[:, :n]


def linear_classifier(x, gamma, beta, weight, bias, *, normalize=True, **prep_kwargs):
    """Convenience one-shot wrapper (prepares params every call).  For an
    inference loop call prepare_linear_classifier_params once and reuse it."""
    # TODO(synk): normalize=False path (skip L2) not implemented; module default is True.
    assert normalize, "kernel always applies L2 normalize (module default)"
    params = prepare_linear_classifier_params(gamma, beta, weight, bias, **prep_kwargs)
    return linear_classifier_apply(x, params)


# ----------------------------------------------------------------------------
# Self-test
# ----------------------------------------------------------------------------

if __name__ == "__main__":
    key = jax.random.PRNGKey(0)
    k_x, k_w, k_x2, k_w2 = jax.random.split(key, 4)

    def reference(x, gamma, beta, weight, bias):
        x2d = x.reshape(x.shape[0], -1).astype(jnp.float32)
        mean = jnp.mean(x2d, axis=-1, keepdims=True)
        var = jnp.mean((x2d - mean) ** 2, axis=-1, keepdims=True)
        xn = (x2d - mean) / jnp.sqrt(var + LN_EPS) * gamma + beta
        xn = xn / jnp.maximum(jnp.linalg.norm(xn, axis=-1, keepdims=True), L2_EPS)
        return xn @ weight.T + bias

    # --- Test 1: resident-weight path (small NCHW input, as in the module) ---
    B, C, H, W = 2, 4, 4, 8                 # dim = 128, num_labels = 16
    dim, num_labels = C * H * W, 16
    x = jax.random.normal(k_x, (B, C, H, W), dtype=jnp.float32)
    # Parameter init mirroring the module: LN weight=1/bias=0, Linear N(0,0.01), bias=0.
    gamma = jnp.ones((dim,), jnp.float32)
    beta = jnp.zeros((dim,), jnp.float32)
    weight = 0.01 * jax.random.normal(k_w, (num_labels, dim), dtype=jnp.float32)
    bias = jnp.zeros((num_labels,), jnp.float32)

    params = prepare_linear_classifier_params(gamma, beta, weight, bias)   # hoisted once
    out = jax.block_until_ready(linear_classifier_apply(x, params))
    assert out.shape == (B, num_labels)
    ref = reference(x, gamma, beta, weight, bias)
    # Tolerance loosened slightly: EUP approx reciprocal + bf16 MXU operands.
    assert jnp.allclose(out, ref, atol=2e-3, rtol=2e-2), "resident path mismatch"

    # --- Test 2: forced K-split path (ragged batch tiles, 2 K tiles) ---------
    B2, dim2, labels2 = 10, 256, 24
    x2 = jax.random.normal(k_x2, (B2, dim2), dtype=jnp.float32)
    gamma2 = 1.0 + 0.1 * jnp.cos(jnp.arange(dim2, dtype=jnp.float32))
    beta2 = 0.05 * jnp.sin(jnp.arange(dim2, dtype=jnp.float32))
    weight2 = 0.01 * jax.random.normal(k_w2, (labels2, dim2), dtype=jnp.float32)
    bias2 = 0.01 * jnp.arange(labels2, dtype=jnp.float32)

    params2 = prepare_linear_classifier_params(
        gamma2, beta2, weight2, bias2, force_k_split=True, k_tile=128)
    out2 = jax.block_until_ready(linear_classifier_apply(x2, params2))
    assert out2.shape == (B2, labels2)
    ref2 = reference(x2, gamma2, beta2, weight2, bias2)
    assert jnp.allclose(out2, ref2, atol=2e-3, rtol=2e-2), "k-split path mismatch"

    print("KERNEL_OK")
</pallas_src>

<mosaic_0001>
module attributes {stable_mosaic.version = 11 : i64} {
  func.func @_lc_resident_kernel(%arg0: i32, %arg1: memref<2x128xf32, #tpu.memory_space<vmem>>, %arg2: memref<1x128xf32, #tpu.memory_space<vmem>>, %arg3: memref<1x128xf32, #tpu.memory_space<vmem>>, %arg4: memref<128x128xbf16, #tpu.memory_space<vmem>>, %arg5: memref<1x128xf32, #tpu.memory_space<vmem>>, %arg6: memref<2x128xf32, #tpu.memory_space<vmem>>) attributes {dimension_semantics = [#tpu.dimension_semantics<parallel>], iteration_bounds = array<i64: 1>, scalar_prefetch = 0 : i64, scratch_operands = 0 : i64, tpu.core_type = #tpu.core_type<tc>, window_params = [{transform_indices = @transform_0, window_bounds = array<i64: 2, 128>}, {pipeline_mode = #tpu.pipeline_mode<synchronous>, transform_indices = @transform_1, window_bounds = array<i64: 1, 128>}, {pipeline_mode = #tpu.pipeline_mode<synchronous>, transform_indices = @transform_2, window_bounds = array<i64: 1, 128>}, {pipeline_mode = #tpu.pipeline_mode<synchronous>, transform_indices = @transform_3, window_bounds = array<i64: 128, 128>}, {pipeline_mode = #tpu.pipeline_mode<synchronous>, transform_indices = @transform_4, window_bounds = array<i64: 1, 128>}, {transform_indices = @transform_5, window_bounds = array<i64: 2, 128>}]} {
    %c0 = arith.constant 0 : index
    %c0_0 = arith.constant 0 : index
    %0 = vector.load %arg1[%c0, %c0_0] : memref<2x128xf32, #tpu.memory_space<vmem>>, vector<2x128xf32>
    %cst = arith.constant dense<0.000000e+00> : vector<2xf32>
    %1 = vector.multi_reduction <add>, %0, %cst [1] : vector<2x128xf32> to vector<2xf32>
    %2 = vector.shape_cast %1 : vector<2xf32> to vector<2x1xf32>
    %cst_1 = arith.constant 7.812500e-03 : f32
    %3 = vector.broadcast %cst_1 : f32 to vector<2x1xf32>
    %4 = arith.mulf %2, %3 : vector<2x1xf32>
    %5 = vector.broadcast %4 : vector<2x1xf32> to vector<2x128xf32>
    %6 = arith.subf %0, %5 : vector<2x128xf32>
    %7 = arith.mulf %6, %6 : vector<2x128xf32>
    %cst_2 = arith.constant dense<0.000000e+00> : vector<2xf32>
    %8 = vector.multi_reduction <add>, %7, %cst_2 [1] : vector<2x128xf32> to vector<2xf32>
    %9 = vector.shape_cast %8 : vector<2xf32> to vector<2x1xf32>
    %cst_3 = arith.constant 7.812500e-03 : f32
    %10 = vector.broadcast %cst_3 : f32 to vector<2x1xf32>
    %11 = arith.mulf %9, %10 : vector<2x1xf32>
    %cst_4 = arith.constant 9.99999974E-6 : f32
    %12 = vector.broadcast %cst_4 : f32 to vector<2x1xf32>
    %13 = arith.addf %11, %12 : vector<2x1xf32>
    %14 = math.rsqrt %13 : vector<2x1xf32>
    %15 = vector.broadcast %14 : vector<2x1xf32> to vector<2x128xf32>
    %16 = arith.mulf %6, %15 : vector<2x128xf32>
    %c0_5 = arith.constant 0 : index
    %c0_6 = arith.constant 0 : index
    %17 = vector.load %arg2[%c0_5, %c0_6] : memref<1x128xf32, #tpu.memory_space<vmem>>, vector<1x128xf32>
    %18 = vector.broadcast %17 : vector<1x128xf32> to vector<2x128xf32>
    %19 = arith.mulf %16, %18 : vector<2x128xf32>
    %c0_7 = arith.constant 0 : index
    %c0_8 = arith.constant 0 : index
    %20 = vector.load %arg3[%c0_7, %c0_8] : memref<1x128xf32, #tpu.memory_space<vmem>>, vector<1x128xf32>
    %21 = vector.broadcast %20 : vector<1x128xf32> to vector<2x128xf32>
    %22 = arith.addf %19, %21 : vector<2x128xf32>
    %23 = arith.mulf %22, %22 : vector<2x128xf32>
    %cst_9 = arith.constant dense<0.000000e+00> : vector<2xf32>
    %24 = vector.multi_reduction <add>, %23, %cst_9 [1] : vector<2x128xf32> to vector<2xf32>
    %25 = vector.shape_cast %24 : vector<2xf32> to vector<2x1xf32>
    %26 = math.sqrt %25 : vector<2x1xf32>
    %cst_10 = arith.constant 9.99999996E-13 : f32
    %27 = vector.broadcast %cst_10 : f32 to vector<2x1xf32>
    %28 = arith.maximumf %26, %27 : vector<2x1xf32>
    %29 = tpu.reciprocal %28 {approx = true} : vector<2x1xf32> -> vector<2x1xf32>
    %30 = vector.broadcast %29 : vector<2x1xf32> to vector<2x128xf32>
    %31 = arith.mulf %22, %30 : vector<2x128xf32>
    %32 = arith.truncf %31 : vector<2x128xf32> to vector<2x128xbf16>
    %c0_11 = arith.constant 0 : index
    %c0_12 = arith.constant 0 : index
    %33 = vector.load %arg4[%c0_11, %c0_12] : memref<128x128xbf16, #tpu.memory_space<vmem>>, vector<128x128xbf16>
    %cst_13 = arith.constant dense<0.000000e+00> : vector<2x128xf32>
    %34 = tpu.matmul %32, %33, %cst_13 {dimension_numbers = #tpu.dot_dimension_numbers<[1], [0], [0], [1], [0, 0, 1, 1], [], []>} : vector<2x128xbf16>, vector<128x128xbf16>, vector<2x128xf32> -> vector<2x128xf32>
    %c0_14 = arith.constant 0 : index
    %c0_15 = arith.constant 0 : index
    %35 = vector.load %arg5[%c0_14, %c0_15] : memref<1x128xf32, #tpu.memory_space<vmem>>, vector<1x128xf32>
    %36 = vector.broadcast %35 : vector<1x128xf32> to vector<2x128xf32>
    %37 = arith.addf %34, %36 : vector<2x128xf32>
    %c0_16 = arith.constant 0 : index
    %c0_17 = arith.constant 0 : index
    %38 = vector.load %arg6[%c0_16, %c0_17] : memref<2x128xf32, #tpu.memory_space<vmem>>, vector<2x128xf32>
    tpu.vector_store %arg6[%c0_16, %c0_17], %37 {strides = array<i32>} : memref<2x128xf32, #tpu.memory_space<vmem>>, vector<2x128xf32>,
    return
  }
  func.func @transform_0(%arg0: i32) -> (i32, i32) {
    %c0_i32 = arith.constant 0 : i32
    %c0_i32_0 = arith.constant 0 : i32
    return %arg0, %c0_i32 : i32, i32
  }
  func.func @transform_1(%arg0: i32) -> (i32, i32) {
    %c0_i32 = arith.constant 0 : i32
    %c0_i32_0 = arith.constant 0 : i32
    %c0_i32_1 = arith.constant 0 : i32
    return %c0_i32, %c0_i32_0 : i32, i32
  }
  func.func @transform_2(%arg0: i32) -> (i32, i32) {
    %c0_i32 = arith.constant 0 : i32
    %c0_i32_0 = arith.constant 0 : i32
    %c0_i32_1 = arith.constant 0 : i32
    return %c0_i32, %c0_i32_0 : i32, i32
  }
  func.func @transform_3(%arg0: i32) -> (i32, i32) {
    %c0_i32 = arith.constant 0 : i32
    %c0_i32_0 = arith.constant 0 : i32
    %c0_i32_1 = arith.constant 0 : i32
    return %c0_i32, %c0_i32_0 : i32, i32
  }
  func.func @transform_4(%arg0: i32) -> (i32, i32) {
    %c0_i32 = arith.constant 0 : i32
    %c0_i32_0 = arith.constant 0 : i32
    %c0_i32_1 = arith.constant 0 : i32
    return %c0_i32, %c0_i32_0 : i32, i32
  }
  func.func @transform_5(%arg0: i32) -> (i32, i32) {
    %c0_i32 = arith.constant 0 : i32
    %c0_i32_0 = arith.constant 0 : i32
    return %arg0, %c0_i32 : i32, i32
  }
}

</mosaic_0001>

<llo_original>
// kernel: tpu_custom_call.1
$region0: #{tpu_custom_call.1}
  #allocation0 [shape = 'u32[]', space=smem, size = 0x4, offset = 0x4, fixed_abs, tag = 'smem constant byte address 0x4 - core index']
  #allocation1 [shape = 'u32[144,128]{1,0:T(1,128)}', space=vmem, size = 0x12000, scoped, tag = 'internal scratch']
  %s0 = inlined_call_operand.hbm [shape: f32[2,128], index: 0, kind: input, shape index: {}]
  %s1 = inlined_call_operand.vmem [shape: f32[1,128], index: 1, kind: input, shape index: {}]
  %s2 = inlined_call_operand.vmem [shape: f32[1,128], index: 2, kind: input, shape index: {}]
  %s3 = inlined_call_operand.hbm [shape: bf16[128,128], index: 3, kind: input, shape index: {}]
  %s4 = inlined_call_operand.vmem [shape: f32[1,128], index: 4, kind: input, shape index: {}]
  %s5 = inlined_call_operand.hbm [shape: f32[2,128], index: 5, kind: output, shape index: {}]
  %s6 = sld [smem:[#allocation0]]
  $region38: #{tpu_custom_call.1} parent=0
    _
  %s8 = ssub.s32 1, %s6
  %s9 = scalar_select 0, %s8, %s6
  $region1: #{tpu_custom_call.1} parent=0
    #allocation2 [shape = 'u8[1024]{0}', space=vmem, size = 0x400, scoped, tag = 'input window, operand 0, single buffered']
    #allocation3 [shape = 's32[1]{0}', space=sflag, size = 0x4, scoped, tag = 'scoped memory for tpu_custom_call.1']
    #allocation4 [shape = 's32[1]{0}', space=sflag, size = 0x4, scoped, tag = 'scoped memory for tpu_custom_call.1']
    #allocation5 [shape = 'u8[32768]{0}', space=vmem, size = 0x8000, scoped, tag = 'input window, operand 3, single buffered']
    #allocation6 [shape = 's32[1]{0}', space=sflag, size = 0x4, scoped, tag = 'scoped memory for tpu_custom_call.1']
    #allocation7 [shape = 'u8[1024]{0}', space=vmem, size = 0x400, scoped, tag = 'output window, operand 0, single buffered']
    %10 = vsyncpa [#allocation3], 0
    %11 = vsyncpa [#allocation6], 0
    %12 = vsyncpa [#allocation4], 0
    // Predicated region
    $region2: #{tpu_custom_call.1} parent=1 // pred_check
      _
    $region3: #{tpu_custom_call.1} parent=1 // pred_check_branch
      %14 = sbr.rel (0) target = $region5
    $region4: #{tpu_custom_call.1} parent=1 // pred_region
      %s16 = ssub.s32 32, 32
      %17 = vsyncadd [#allocation3], %s16
      %s19 = sshll.u32 [#allocation2], 4
      %s20 = int_to_ptr.vmem [resolvable:$true] %s19
      %22 = dma.hbm_to_vmem [thread:$0]  %s0, 32, %s20, [#allocation3]
    $region5: #{tpu_custom_call.1} parent=1 // pred_fallthru
      _
    // Predicated region
    $region6: #{tpu_custom_call.1} parent=1 // pred_check
      _
    $region7: #{tpu_custom_call.1} parent=1 // pred_check_branch
      %24 = sbr.rel (0) target = $region9
    $region8: #{tpu_custom_call.1} parent=1 // pred_region
      _
    $region9: #{tpu_custom_call.1} parent=1 // pred_fallthru
      _
    // Predicated region
    $region10: #{tpu_custom_call.1} parent=1 // pred_check
      _
    $region11: #{tpu_custom_call.1} parent=1 // pred_check_branch
      %26 = sbr.rel (0) target = $region13
    $region12: #{tpu_custom_call.1} parent=1 // pred_region
      _
    $region13: #{tpu_custom_call.1} parent=1 // pred_fallthru
      _
    // Predicated region
    $region14: #{tpu_custom_call.1} parent=1 // pred_check
      _
    $region15: #{tpu_custom_call.1} parent=1 // pred_check_branch
      %28 = sbr.rel (0) target = $region17
    $region16: #{tpu_custom_call.1} parent=1 // pred_region
      %s30 = ssub.s32 1024, 1024
      %31 = vsyncadd [#allocation6], %s30
      %s32 = sshll.u32 [#allocation5], 4
      %s33 = int_to_ptr.vmem [resolvable:$true] %s32
      %38 = dma.hbm_to_vmem [thread:$0]  %s3, 1024, %s33, [#allocation6], 64, 64, 4
    $region17: #{tpu_custom_call.1} parent=1 // pred_fallthru
      _
    // Predicated region
    $region18: #{tpu_custom_call.1} parent=1 // pred_check
      _
    $region19: #{tpu_custom_call.1} parent=1 // pred_check_branch
      %40 = sbr.rel (0) target = $region21
    $region20: #{tpu_custom_call.1} parent=1 // pred_region
      _
    $region21: #{tpu_custom_call.1} parent=1 // pred_fallthru
      _
    // Predicated region
    $region22: #{tpu_custom_call.1} parent=1 // pred_check
      _
    $region23: #{tpu_custom_call.1} parent=1 // pred_check_branch
      %42 = sbr.rel (0) target = $region25
    $region24: #{tpu_custom_call.1} parent=1 // pred_region
      %43 = dma.done [#allocation3], 32
    $region25: #{tpu_custom_call.1} parent=1 // pred_fallthru
      _
    // Predicated region
    $region26: #{tpu_custom_call.1} parent=1 // pred_check
      _
    $region27: #{tpu_custom_call.1} parent=1 // pred_check_branch
      %45 = sbr.rel (0) target = $region29
    $region28: #{tpu_custom_call.1} parent=1 // pred_region
      %46 = dma.done [#allocation6], 1024
    $region29: #{tpu_custom_call.1} parent=1 // pred_fallthru
      _
    %v48 = vld [vmem:[#allocation2] sm:$0x3]
    %vm49 = vcmask 1041408
    %v50 = vsel %vm49, %v48, 0.0
    %51 = vadd.xlane.f32.xlu0 %v50
    %v52 = vpop.xlane.xlu0 %51
    %v53 = vmul.f32 %v52, 0.0078125
    %v54 = vsub.f32 %v48, %v53
    %v55 = vmul.f32 %v54, %v54
    %v56 = vsel %vm49, %v55, 0.0
    %57 = vadd.xlane.f32.xlu0 %v56
    %v58 = vpop.xlane.xlu0 %57
    %v59 = vmul.f32 %v58, 0.0078125
    %v60 = vadd.f32 %v59, 1e-05
    %v61 = vrsqrt.pop %v60
    %v62 = vmul.f32 %v54, %v61
    %v63 = vld [vmem:[%s1] sm:$0x1]
    %v65 = vlaneseq
    %v66 = vshrl.u32 %v65, 7
    %v67 = vsub.s32 0, %v66
    %v68 = vrot.slane %v63, %v67
    %v70 = vmul.f32 %v62, %v68
    %v71 = vld [vmem:[%s2] sm:$0x1]
    %v73 = vlaneseq
    %v74 = vshrl.u32 %v73, 7
    %v75 = vsub.s32 0, %v74
    %v76 = vrot.slane %v71, %v75
    %v78 = vadd.f32 %v70, %v76
    %v79 = vmul.f32 %v78, %v78
    %v80 = vsel %vm49, %v79, 0.0
    %81 = vadd.xlane.f32.xlu0 %v80
    %v82 = vpop.xlane.xlu0 %81
    %v83 = vrsqrt.pop %v82
    %v84 = vmul.f32 %v82, %v83
    %vm85 = vcmp.eq.f32.partialorder %v82, inf
    %v86 = vsel %vm85, %v82, %v84
    %vm87 = vcmp.eq.f32.partialorder %v82, 0.0
    %v88 = vand.u32 %v82, 2147483648
    %v89 = vsel %vm87, %v88, %v86
    %v90 = vmax.f32 %v89, 1e-12
    %v91 = vrcp.pop %v90
    %v92 = vmul.f32 %v78, %v91
    %v93 = vpack.c.bf16 %v92, %v92
    %v94 = vld [vmem:[#allocation5] sm:$0xf]
    %v95 = vld [vmem:[#allocation5 + $0x4] sm:$0xf]
    %v96 = vld [vmem:[#allocation5 + $0x8] sm:$0xf]
    %v97 = vld [vmem:[#allocation5 + $0xc] sm:$0xf]
    %v98 = vld [vmem:[#allocation5 + $0x10] sm:$0xf]
    %v99 = vld [vmem:[#allocation5 + $0x14] sm:$0xf]
    %v100 = vld [vmem:[#allocation5 + $0x18] sm:$0xf]
    %v101 = vld [vmem:[#allocation5 + $0x1c] sm:$0xf]
    %v102 = vld [vmem:[#allocation5 + $0x20] sm:$0xf]
    %v103 = vld [vmem:[#allocation5 + $0x24] sm:$0xf]
    %v104 = vld [vmem:[#allocation5 + $0x28] sm:$0xf]
    %v105 = vld [vmem:[#allocation5 + $0x2c] sm:$0xf]
    %v106 = vld [vmem:[#allocation5 + $0x30] sm:$0xf]
    %v107 = vld [vmem:[#allocation5 + $0x34] sm:$0xf]
    %v108 = vld [vmem:[#allocation5 + $0x38] sm:$0xf]
    %v109 = vld [vmem:[#allocation5 + $0x3c] sm:$0xf]
    %v110 = vld [vmem:[%s4] sm:$0x1]
    %v112 = vlaneseq
    %v113 = vshrl.u32 %v112, 7
    %v114 = vsub.s32 0, %v113
    %v115 = vrot.slane %v110, %v114
    %v133 = vunpack.c.l.b16 %v94
    %v134 = vunpack.c.l.b16 %v95
    %v135 = vunpack.c.l.b16 %v96
    %v136 = vunpack.c.l.b16 %v97
    %v137 = vunpack.c.l.b16 %v98
    %v138 = vunpack.c.l.b16 %v99
    %v139 = vunpack.c.l.b16 %v100
    %v140 = vunpack.c.l.b16 %v101
    %v141 = vunpack.c.l.b16 %v102
    %v142 = vunpack.c.l.b16 %v103
    %v143 = vunpack.c.l.b16 %v104
    %v144 = vunpack.c.l.b16 %v105
    %v145 = vunpack.c.l.b16 %v106
    %v146 = vunpack.c.l.b16 %v107
    %v147 = vunpack.c.l.b16 %v108
    %v148 = vunpack.c.l.b16 %v109
    %v149 = vpack.c.b16 %v134, %v133
    %v150 = vpack.c.b16 %v136, %v135
    %v151 = vpack.c.b16 %v138, %v137
    %v152 = vpack.c.b16 %v140, %v139
    %v153 = vpack.c.b16 %v142, %v141
    %v154 = vpack.c.b16 %v144, %v143
    %v155 = vpack.c.b16 %v146, %v145
    %v156 = vpack.c.b16 %v148, %v147
    %165 = vmatprep.subr.bf16.mxu0 0
    %166 = vmatpush1.bf16.msra.mxu0 %v149
    %167 = vmatprep.subr.bf16.mxu0 0
    %168 = vmatpush1.bf16.msra.mxu0 %v150
    %169 = vmatprep.subr.bf16.mxu0 0
    %170 = vmatpush1.bf16.msra.mxu0 %v151
    %171 = vmatprep.subr.bf16.mxu0 0
    %172 = vmatpush1.bf16.msra.mxu0 %v152
    %173 = vmatprep.subr.bf16.mxu0 0
    %174 = vmatpush1.bf16.msra.mxu0 %v153
    %175 = vmatprep.subr.bf16.mxu0 0
    %176 = vmatpush1.bf16.msra.mxu0 %v154
    %177 = vmatprep.subr.bf16.mxu0 0
    %178 = vmatpush1.bf16.msra.mxu0 %v155
    %179 = vmatprep.subr.bf16.mxu0 0
    %180 = vmatpush1.bf16.msra.mxu0 %v156
    %181 = vmatprep.subr.bf16.mxu0 0
    %182 = vmatpush1.bf16.msra.mxu0 0
    %183 = vmatprep.subr.bf16.mxu0 0
    %184 = vmatpush1.bf16.msra.mxu0 0
    %185 = vmatprep.subr.bf16.mxu0 0
    %186 = vmatpush1.bf16.msra.mxu0 0
    %187 = vmatprep.subr.bf16.mxu0 0
    %188 = vmatpush1.bf16.msra.mxu0 0
    %189 = vmatprep.subr.bf16.mxu0 0
    %190 = vmatpush1.bf16.msra.mxu0 0
    %191 = vmatprep.subr.bf16.mxu0 0
    %192 = vmatpush1.bf16.msra.mxu0 0
    %193 = vmatprep.subr.bf16.mxu0 0
    %194 = vmatpush1.bf16.msra.mxu0 0
    %195 = vmatprep.subr.bf16.mxu0 0
    %196 = vmatpush1.bf16.msra.mxu0 0
    %197 = vmatprep.mubr.bf16.mxu0 0
    %198 = vmatmul.mubr.bf16.gmra.mrb[0].mxu0 %v93
    %v199 = vpop.f32.mrb[0].mxu0
    %v200 = vadd.f32 %v115, %v199
    %v201 = vpop.f32.mrb[0].mxu0
    %v202 = vpop.f32.mrb[0].mxu0
    %v203 = vpop.f32.mrb[0].mxu0
    %204 = vdwg.mxu0
    %205 = vst [vmem:[#allocation7] sm:$0x3] %v200
    // Predicated region
    $region30: #{tpu_custom_call.1} parent=1 // pred_check
      _
    $region31: #{tpu_custom_call.1} parent=1 // pred_check_branch
      %207 = sbr.rel (0) target = $region33
    $region32: #{tpu_custom_call.1} parent=1 // pred_region
      %s209 = ssub.s32 32, 32
      %210 = vsyncadd [#allocation4], %s209
      %s212 = sshll.u32 [#allocation7], 4
      %s213 = int_to_ptr.vmem [resolvable:$true] %s212
      %215 = dma.vmem_to_hbm [thread:$0]  %s213, 32, %s5, [#allocation4]
    $region33: #{tpu_custom_call.1} parent=1 // pred_fallthru
      _
    // Predicated region
    $region34: #{tpu_custom_call.1} parent=1 // pred_check
      _
    $region35: #{tpu_custom_call.1} parent=1 // pred_check_branch
      %217 = sbr.rel (0) target = $region37
    $region36: #{tpu_custom_call.1} parent=1 // pred_region
      %218 = dma.done [#allocation4], 32
    $region37: #{tpu_custom_call.1} parent=1 // pred_fallthru
      _
    %219 = vsyncpa [#allocation3], 1
    %220 = vsyncpa [#allocation6], 1
    %221 = vsyncpa [#allocation4], 1

</llo_original>
